<compile_context>
chip_gen: v5e
topology: v5e:2x2
jax: 0.10.0
libtpu: 0.0.40
codegen_flags: <defaults>
</compile_context>

<pallas_src>
import functools

import jax
import jax.numpy as jnp
from jax import lax
from jax.experimental import pallas as pl
from jax.experimental.pallas import tpu as pltpu

STATE_SIZE = 3
ACTION_SIZE = 5
HIDDEN = 24
HEAD_PAD = 8  # actor logits (5) + value (1) + 2 pad rows -> one 8-sublane slab


def _round_up(n, m):
    return ((n + m - 1) // m) * m


def _pick_tile(batch, tile_b, num_cores):
    """Lane-dense batch tile (multiple of 128); >= num_cores tiles if possible."""
    b128 = _round_up(max(batch, 1), 128)
    tile = min(_round_up(max(tile_b, 128), 128), b128)
    if num_cores > 1:
        per_core = _round_up(-(-b128 // num_cores), 128)
        tile = min(tile, max(128, per_core))
    return tile


def actor_critic_kernel(x_ref, w1_ref, b1_ref, w2_ref, b2_ref,
                        wh_ref, bh_ref, out_ref):
    """One batch tile, feature-major:
         shared : ReLU(W1 @ x + b1) -> ReLU(W2 @ h1 + b2)
         heads  : Wh @ h2 + bh   (rows 0:5 actor logits, row 5 value, rows 6:8 pad)
       Softmax is over the 5 actor sublanes; output slab is
       rows[0:5]=action probs, row[5]=state value, rows[6:8]=0.
    """
    x = x_ref[...]                                                  # (3, TILE)

    # Layer 1: K=3 MXU push, lane-dense (24, TILE) result.
    h1 = jnp.dot(w1_ref[...], x, preferred_element_type=jnp.float32) + b1_ref[...]
    h1 = jnp.maximum(h1, 0.0)                                       # (24, TILE)

    # Layer 2.
    h2 = jnp.dot(w2_ref[...], h1, preferred_element_type=jnp.float32) + b2_ref[...]
    h2 = jnp.maximum(h2, 0.0)                                       # (24, TILE)

    # Fused actor + critic head: single MXU push -> (8, TILE).
    z = jnp.dot(wh_ref[...], h2, preferred_element_type=jnp.float32) + bh_ref[...]

    # Masked, numerically-stable softmax over the 5 actor rows (sublane axis).
    row = lax.broadcasted_iota(jnp.int32, z.shape, 0)
    actor_mask = row < ACTION_SIZE
    value_mask = row == ACTION_SIZE
    zm = jnp.where(actor_mask, z, -jnp.inf)
    m = jnp.max(zm, axis=0, keepdims=True)                          # (1, TILE)
    e = jnp.exp(zm - m)                                             # pad/value rows -> 0
    denom = jnp.sum(e, axis=0, keepdims=True)                       # (1, TILE)
    # approx=False keeps probs exact to 1e-5; approx=True would move the divide
    # to the EUP at ~1e-3 relative error.
    probs = e * pl.reciprocal(denom, approx=False)

    out_ref[...] = probs + jnp.where(value_mask, z, 0.0)            # (8, TILE)


@functools.partial(jax.jit, static_argnames=("tile_b", "num_cores"))
def actor_critic_forward(x, kparams, *, tile_b=512, num_cores=1):
    """x: (B, 3) float32 -> (action_probs (B, 5), state_value (B, 1)).

    tile_b:    batch rows per grid step (rounded to 128). On single-TC chips
               (v5e/v6e) larger tiles (1024+) amortize per-step overhead.
    num_cores: set 2 on v7x so the "parallel" batch axis has >= 2 tiles.
    """
    B = x.shape[0]
    if B == 0:
        return (jnp.zeros((0, ACTION_SIZE), jnp.float32),
                jnp.zeros((0, 1), jnp.float32))

    tile = _pick_tile(B, tile_b, num_cores)
    b_pad = _round_up(B, tile)

    # Feature-major, lane-dense input slab (3, b_pad).
    xt = x.T
    if b_pad != B:
        xt = jnp.pad(xt, ((0, 0), (0, b_pad - B)))

    grid = (b_pad // tile,)
    const = lambda i: (0, 0)  # weights/biases stay VMEM-resident across tiles

    out = pl.pallas_call(
        actor_critic_kernel,
        out_shape=jax.ShapeDtypeStruct((HEAD_PAD, b_pad), jnp.float32),
        grid=grid,
        in_specs=[
            pl.BlockSpec((STATE_SIZE, tile), lambda i: (0, i)),
            pl.BlockSpec((HIDDEN, STATE_SIZE), const),
            pl.BlockSpec((HIDDEN, 1), const),
            pl.BlockSpec((HIDDEN, HIDDEN), const),
            pl.BlockSpec((HIDDEN, 1), const),
            pl.BlockSpec((HEAD_PAD, HIDDEN), const),
            pl.BlockSpec((HEAD_PAD, 1), const),
        ],
        out_specs=pl.BlockSpec((HEAD_PAD, tile), lambda i: (0, i)),
        compiler_params=pltpu.CompilerParams(
            dimension_semantics=("parallel",)),
    )(xt, kparams["w1"], kparams["b1"], kparams["w2"], kparams["b2"],
      kparams["wh"], kparams["bh"])

    probs = out[:ACTION_SIZE, :B].T
    value = out[ACTION_SIZE:ACTION_SIZE + 1, :B].T
    return probs, value


def init_params(key):
    """Torch-style nn.Linear init: W (out, in), b (out,), U(-1/sqrt(fan_in), +)."""
    ks = jax.random.split(key, 8)

    def linear(kw, kb, fan_in, fan_out):
        bound = 1.0 / (fan_in ** 0.5)
        w = jax.random.uniform(kw, (fan_out, fan_in), jnp.float32, -bound, bound)
        b = jax.random.uniform(kb, (fan_out,), jnp.float32, -bound, bound)
        return w, b

    w1, b1 = linear(ks[0], ks[1], STATE_SIZE, HIDDEN)
    w2, b2 = linear(ks[2], ks[3], HIDDEN, HIDDEN)
    wa, ba = linear(ks[4], ks[5], HIDDEN, ACTION_SIZE)
    wc, bc = linear(ks[6], ks[7], HIDDEN, 1)
    return dict(w1=w1, b1=b1, w2=w2, b2=b2, wa=wa, ba=ba, wc=wc, bc=bc)


def pack_params(p):
    """One-time packing for the kernel (done at init, not per forward call)."""
    pad = HEAD_PAD - ACTION_SIZE - 1
    wh = jnp.concatenate(
        [p["wa"], p["wc"], jnp.zeros((pad, HIDDEN), jnp.float32)], axis=0)
    bh = jnp.concatenate(
        [p["ba"], p["bc"], jnp.zeros((pad,), jnp.float32)], axis=0)
    return dict(w1=p["w1"], b1=p["b1"].reshape(HIDDEN, 1),
                w2=p["w2"], b2=p["b2"].reshape(HIDDEN, 1),
                wh=wh, bh=bh.reshape(HEAD_PAD, 1))


def reference_forward(x, p):
    h1 = jnp.maximum(x @ p["w1"].T + p["b1"], 0.0)
    h2 = jnp.maximum(h1 @ p["w2"].T + p["b2"], 0.0)
    probs = jax.nn.softmax(h2 @ p["wa"].T + p["ba"], axis=-1)
    value = h2 @ p["wc"].T + p["bc"]
    return probs, value


if __name__ == "__main__":
    key = jax.random.PRNGKey(0)
    kp, kx = jax.random.split(key)
    torch_params = init_params(kp)
    kparams = pack_params(torch_params)   # packed once, outside the forward path

    # Small-batch check (single lane-dense tile of 128, batch padded).
    batch = 2
    x = jax.random.normal(kx, (batch, STATE_SIZE), dtype=jnp.float32)
    probs, value = actor_critic_forward(x, kparams)
    jax.block_until_ready((probs, value))

    ref_probs, ref_value = reference_forward(x, torch_params)
    assert probs.shape == (batch, ACTION_SIZE)
    assert value.shape == (batch, 1)
    assert jnp.allclose(probs, ref_probs, atol=1e-5, rtol=1e-5)
    assert jnp.allclose(value, ref_value, atol=1e-5, rtol=1e-5)
    assert jnp.allclose(jnp.sum(probs, axis=-1), 1.0, atol=1e-5)

    # Multi-tile check (batch grid, pipelining, ragged tail: 300 -> 3 x 128).
    x2 = jax.random.normal(jax.random.PRNGKey(1), (300, STATE_SIZE),
                           dtype=jnp.float32)
    probs2, value2 = actor_critic_forward(x2, kparams, tile_b=128)
    jax.block_until_ready((probs2, value2))
    ref_probs2, ref_value2 = reference_forward(x2, torch_params)
    assert probs2.shape == (300, ACTION_SIZE) and value2.shape == (300, 1)
    assert jnp.allclose(probs2, ref_probs2, atol=1e-5, rtol=1e-5)
    assert jnp.allclose(value2, ref_value2, atol=1e-5, rtol=1e-5)

    # v7x-style call: num_cores=2 forces >= 2 batch tiles for megacore sharding.
    probs3, value3 = actor_critic_forward(x2, kparams, num_cores=2)
    jax.block_until_ready((probs3, value3))
    assert jnp.allclose(probs3, ref_probs2, atol=1e-5, rtol=1e-5)
    assert jnp.allclose(value3, ref_value2, atol=1e-5, rtol=1e-5)

    print("KERNEL_OK")
</pallas_src>

<mosaic_0001>
module attributes {stable_mosaic.version = 11 : i64} {
  func.func @actor_critic_kernel(%arg0: i32, %arg1: memref<3x128xf32, #tpu.memory_space<vmem>>, %arg2: memref<24x3xf32, #tpu.memory_space<vmem>>, %arg3: memref<24x1xf32, #tpu.memory_space<vmem>>, %arg4: memref<24x24xf32, #tpu.memory_space<vmem>>, %arg5: memref<24x1xf32, #tpu.memory_space<vmem>>, %arg6: memref<8x24xf32, #tpu.memory_space<vmem>>, %arg7: memref<8x1xf32, #tpu.memory_space<vmem>>, %arg8: memref<8x128xf32, #tpu.memory_space<vmem>>) attributes {dimension_semantics = [#tpu.dimension_semantics<parallel>], iteration_bounds = array<i64: 1>, scalar_prefetch = 0 : i64, scratch_operands = 0 : i64, tpu.core_type = #tpu.core_type<tc>, window_params = [{transform_indices = @transform_0, window_bounds = array<i64: 3, 128>}, {pipeline_mode = #tpu.pipeline_mode<synchronous>, transform_indices = @transform_1, window_bounds = array<i64: 24, 3>}, {pipeline_mode = #tpu.pipeline_mode<synchronous>, transform_indices = @transform_2, window_bounds = array<i64: 24, 1>}, {pipeline_mode = #tpu.pipeline_mode<synchronous>, transform_indices = @transform_3, window_bounds = array<i64: 24, 24>}, {pipeline_mode = #tpu.pipeline_mode<synchronous>, transform_indices = @transform_4, window_bounds = array<i64: 24, 1>}, {pipeline_mode = #tpu.pipeline_mode<synchronous>, transform_indices = @transform_5, window_bounds = array<i64: 8, 24>}, {pipeline_mode = #tpu.pipeline_mode<synchronous>, transform_indices = @transform_6, window_bounds = array<i64: 8, 1>}, {transform_indices = @transform_7, window_bounds = array<i64: 8, 128>}]} {
    %c0 = arith.constant 0 : index
    %c0_0 = arith.constant 0 : index
    %0 = vector.load %arg1[%c0, %c0_0] : memref<3x128xf32, #tpu.memory_space<vmem>>, vector<3x128xf32>
    %c0_1 = arith.constant 0 : index
    %c0_2 = arith.constant 0 : index
    %1 = vector.load %arg2[%c0_1, %c0_2] : memref<24x3xf32, #tpu.memory_space<vmem>>, vector<24x3xf32>
    %cst = arith.constant dense<0.000000e+00> : vector<24x128xf32>
    %2 = tpu.matmul %1, %0, %cst {dimension_numbers = #tpu.dot_dimension_numbers<[1], [0], [0], [1], [0, 0, 1, 1], [], []>} : vector<24x3xf32>, vector<3x128xf32>, vector<24x128xf32> -> vector<24x128xf32>
    %c0_3 = arith.constant 0 : index
    %c0_4 = arith.constant 0 : index
    %3 = vector.load %arg3[%c0_3, %c0_4] : memref<24x1xf32, #tpu.memory_space<vmem>>, vector<24x1xf32>
    %4 = vector.broadcast %3 : vector<24x1xf32> to vector<24x128xf32>
    %5 = arith.addf %2, %4 : vector<24x128xf32>
    %cst_5 = arith.constant 0.000000e+00 : f32
    %6 = vector.broadcast %cst_5 : f32 to vector<24x128xf32>
    %7 = arith.maximumf %5, %6 : vector<24x128xf32>
    %c0_6 = arith.constant 0 : index
    %c0_7 = arith.constant 0 : index
    %8 = vector.load %arg4[%c0_6, %c0_7] : memref<24x24xf32, #tpu.memory_space<vmem>>, vector<24x24xf32>
    %cst_8 = arith.constant dense<0.000000e+00> : vector<24x128xf32>
    %9 = tpu.matmul %8, %7, %cst_8 {dimension_numbers = #tpu.dot_dimension_numbers<[1], [0], [0], [1], [0, 0, 1, 1], [], []>} : vector<24x24xf32>, vector<24x128xf32>, vector<24x128xf32> -> vector<24x128xf32>
    %c0_9 = arith.constant 0 : index
    %c0_10 = arith.constant 0 : index
    %10 = vector.load %arg5[%c0_9, %c0_10] : memref<24x1xf32, #tpu.memory_space<vmem>>, vector<24x1xf32>
    %11 = vector.broadcast %10 : vector<24x1xf32> to vector<24x128xf32>
    %12 = arith.addf %9, %11 : vector<24x128xf32>
    %cst_11 = arith.constant 0.000000e+00 : f32
    %13 = vector.broadcast %cst_11 : f32 to vector<24x128xf32>
    %14 = arith.maximumf %12, %13 : vector<24x128xf32>
    %c0_12 = arith.constant 0 : index
    %c0_13 = arith.constant 0 : index
    %15 = vector.load %arg6[%c0_12, %c0_13] : memref<8x24xf32, #tpu.memory_space<vmem>>, vector<8x24xf32>
    %cst_14 = arith.constant dense<0.000000e+00> : vector<8x128xf32>
    %16 = tpu.matmul %15, %14, %cst_14 {dimension_numbers = #tpu.dot_dimension_numbers<[1], [0], [0], [1], [0, 0, 1, 1], [], []>} : vector<8x24xf32>, vector<24x128xf32>, vector<8x128xf32> -> vector<8x128xf32>
    %c0_15 = arith.constant 0 : index
    %c0_16 = arith.constant 0 : index
    %17 = vector.load %arg7[%c0_15, %c0_16] : memref<8x1xf32, #tpu.memory_space<vmem>>, vector<8x1xf32>
    %18 = vector.broadcast %17 : vector<8x1xf32> to vector<8x128xf32>
    %19 = arith.addf %16, %18 : vector<8x128xf32>
    %20 = tpu.iota {dimensions = array<i32: 0>} : vector<8x128xi32>
    %c5_i32 = arith.constant 5 : i32
    %21 = vector.broadcast %c5_i32 : i32 to vector<8x128xi32>
    %22 = arith.cmpi slt, %20, %21 : vector<8x128xi32>
    %c5_i32_17 = arith.constant 5 : i32
    %23 = vector.broadcast %c5_i32_17 : i32 to vector<8x128xi32>
    %24 = arith.cmpi eq, %20, %23 : vector<8x128xi32>
    %cst_18 = arith.constant 0xFF800000 : f32
    %25 = vector.broadcast %cst_18 : f32 to vector<8x128xf32>
    %26 = arith.select %22, %19, %25 : vector<8x128xi1>, vector<8x128xf32>
    %cst_19 = arith.constant dense<0xFF800000> : vector<128xf32>
    %27 = vector.multi_reduction <maximumf>, %26, %cst_19 [0] : vector<8x128xf32> to vector<128xf32>
    %28 = vector.shape_cast %27 : vector<128xf32> to vector<1x128xf32>
    %29 = vector.broadcast %28 : vector<1x128xf32> to vector<8x128xf32>
    %30 = arith.subf %26, %29 : vector<8x128xf32>
    %31 = math.exp %30 : vector<8x128xf32>
    %cst_20 = arith.constant dense<0.000000e+00> : vector<128xf32>
    %32 = vector.multi_reduction <add>, %31, %cst_20 [0] : vector<8x128xf32> to vector<128xf32>
    %33 = vector.shape_cast %32 : vector<128xf32> to vector<1x128xf32>
    %34 = tpu.reciprocal %33 : vector<1x128xf32> -> vector<1x128xf32>
    %35 = vector.broadcast %34 : vector<1x128xf32> to vector<8x128xf32>
    %36 = arith.mulf %31, %35 : vector<8x128xf32>
    %cst_21 = arith.constant 0.000000e+00 : f32
    %37 = vector.broadcast %cst_21 : f32 to vector<8x128xf32>
    %38 = arith.select %24, %19, %37 : vector<8x128xi1>, vector<8x128xf32>
    %39 = arith.addf %36, %38 : vector<8x128xf32>
    %c0_22 = arith.constant 0 : index
    %c0_23 = arith.constant 0 : index
    %40 = vector.load %arg8[%c0_22, %c0_23] : memref<8x128xf32, #tpu.memory_space<vmem>>, vector<8x128xf32>
    tpu.vector_store %arg8[%c0_22, %c0_23], %39 {strides = array<i32>} : memref<8x128xf32, #tpu.memory_space<vmem>>, vector<8x128xf32>,
    return
  }
  func.func @transform_0(%arg0: i32) -> (i32, i32) {
    %c0_i32 = arith.constant 0 : i32
    %c0_i32_0 = arith.constant 0 : i32
    return %c0_i32, %arg0 : i32, i32
  }
  func.func @transform_1(%arg0: i32) -> (i32, i32) {
    %c0_i32 = arith.constant 0 : i32
    %c0_i32_0 = arith.constant 0 : i32
    %c0_i32_1 = arith.constant 0 : i32
    return %c0_i32, %c0_i32_0 : i32, i32
  }
  func.func @transform_2(%arg0: i32) -> (i32, i32) {
    %c0_i32 = arith.constant 0 : i32
    %c0_i32_0 = arith.constant 0 : i32
    %c0_i32_1 = arith.constant 0 : i32
    return %c0_i32, %c0_i32_0 : i32, i32
  }
  func.func @transform_3(%arg0: i32) -> (i32, i32) {
    %c0_i32 = arith.constant 0 : i32
    %c0_i32_0 = arith.constant 0 : i32
    %c0_i32_1 = arith.constant 0 : i32
    return %c0_i32, %c0_i32_0 : i32, i32
  }
  func.func @transform_4(%arg0: i32) -> (i32, i32) {
    %c0_i32 = arith.constant 0 : i32
    %c0_i32_0 = arith.constant 0 : i32
    %c0_i32_1 = arith.constant 0 : i32
    return %c0_i32, %c0_i32_0 : i32, i32
  }
  func.func @transform_5(%arg0: i32) -> (i32, i32) {
    %c0_i32 = arith.constant 0 : i32
    %c0_i32_0 = arith.constant 0 : i32
    %c0_i32_1 = arith.constant 0 : i32
    return %c0_i32, %c0_i32_0 : i32, i32
  }
  func.func @transform_6(%arg0: i32) -> (i32, i32) {
    %c0_i32 = arith.constant 0 : i32
    %c0_i32_0 = arith.constant 0 : i32
    %c0_i32_1 = arith.constant 0 : i32
    return %c0_i32, %c0_i32_0 : i32, i32
  }
  func.func @transform_7(%arg0: i32) -> (i32, i32) {
    %c0_i32 = arith.constant 0 : i32
    %c0_i32_0 = arith.constant 0 : i32
    return %c0_i32, %arg0 : i32, i32
  }
}

</mosaic_0001>

<llo_original>
// kernel: actor_critic_forward.1
$region0: #{actor_critic_forward.1}
  #allocation0 [shape = 'u32[]', space=smem, size = 0x4, offset = 0x4, fixed_abs, tag = 'smem constant byte address 0x4 - core index']
  #allocation1 [shape = 'u32[72,128]{1,0:T(1,128)}', space=vmem, size = 0x9000, scoped, tag = 'internal scratch']
  %s0 = inlined_call_operand.vmem [shape: f32[3,128], index: 0, kind: input, shape index: {}]
  %s1 = inlined_call_operand.vmem [shape: f32[24,3], index: 1, kind: input, shape index: {}]
  %s2 = inlined_call_operand.vmem [shape: f32[24,1], index: 2, kind: input, shape index: {}]
  %s3 = inlined_call_operand.vmem [shape: f32[24,24], index: 3, kind: input, shape index: {}]
  %s4 = inlined_call_operand.vmem [shape: f32[24,1], index: 4, kind: input, shape index: {}]
  %s5 = inlined_call_operand.vmem [shape: f32[8,24], index: 5, kind: input, shape index: {}]
  %s6 = inlined_call_operand.vmem [shape: f32[8,1], index: 6, kind: input, shape index: {}]
  %s7 = inlined_call_operand.vmem [shape: f32[8,128], index: 7, kind: output, shape index: {}]
  %s8 = sld [smem:[#allocation0]]
  $region38: #{actor_critic_forward.1} parent=0
    _
  %s10 = ssub.s32 1, %s8
  %s11 = scalar_select 0, %s10, %s8
  // Predicated region
  $region2: #{actor_critic_forward.1} parent=0 // pred_check
    _
  $region3: #{actor_critic_forward.1} parent=0 // pred_check_branch
    %13 = sbr.rel (0) target = $region5
  $region4: #{actor_critic_forward.1} parent=0 // pred_region
    _
  $region5: #{actor_critic_forward.1} parent=0 // pred_fallthru
    _
  // Predicated region
  $region6: #{actor_critic_forward.1} parent=0 // pred_check
    _
  $region7: #{actor_critic_forward.1} parent=0 // pred_check_branch
    %15 = sbr.rel (0) target = $region9
  $region8: #{actor_critic_forward.1} parent=0 // pred_region
    _
  $region9: #{actor_critic_forward.1} parent=0 // pred_fallthru
    _
  // Predicated region
  $region10: #{actor_critic_forward.1} parent=0 // pred_check
    _
  $region11: #{actor_critic_forward.1} parent=0 // pred_check_branch
    %17 = sbr.rel (0) target = $region13
  $region12: #{actor_critic_forward.1} parent=0 // pred_region
    _
  $region13: #{actor_critic_forward.1} parent=0 // pred_fallthru
    _
  // Predicated region
  $region14: #{actor_critic_forward.1} parent=0 // pred_check
    _
  $region15: #{actor_critic_forward.1} parent=0 // pred_check_branch
    %19 = sbr.rel (0) target = $region17
  $region16: #{actor_critic_forward.1} parent=0 // pred_region
    _
  $region17: #{actor_critic_forward.1} parent=0 // pred_fallthru
    _
  // Predicated region
  $region18: #{actor_critic_forward.1} parent=0 // pred_check
    _
  $region19: #{actor_critic_forward.1} parent=0 // pred_check_branch
    %21 = sbr.rel (0) target = $region21
  $region20: #{actor_critic_forward.1} parent=0 // pred_region
    _
  $region21: #{actor_critic_forward.1} parent=0 // pred_fallthru
    _
  // Predicated region
  $region22: #{actor_critic_forward.1} parent=0 // pred_check
    _
  $region23: #{actor_critic_forward.1} parent=0 // pred_check_branch
    %23 = sbr.rel (0) target = $region25
  $region24: #{actor_critic_forward.1} parent=0 // pred_region
    _
  $region25: #{actor_critic_forward.1} parent=0 // pred_fallthru
    _
  // Predicated region
  $region26: #{actor_critic_forward.1} parent=0 // pred_check
    _
  $region27: #{actor_critic_forward.1} parent=0 // pred_check_branch
    %25 = sbr.rel (0) target = $region29
  $region28: #{actor_critic_forward.1} parent=0 // pred_region
    _
  $region29: #{actor_critic_forward.1} parent=0 // pred_fallthru
    _
  %v26 = vld [vmem:[%s0] sm:$0x7]
  %v27 = vld [vmem:[%s1] sm:$0xff]
  %v28 = vld [vmem:[%s1 + $0x8] sm:$0xff]
  %v29 = vld [vmem:[%s1 + $0x10] sm:$0xff]
  %v30 = vld [vmem:[%s2] sm:$0xff]
  %v31 = vld [vmem:[%s2 + $0x8] sm:$0xff]
  %v32 = vld [vmem:[%s2 + $0x10] sm:$0xff]
  %34 = vset.pattern.permute.xlu0 0
  %35 = vperm.xlu0 %34, %v30
  %v36 = vpop.permute.xlu0 %35
  %39 = vset.pattern.permute.xlu0 0
  %40 = vperm.xlu0 %39, %v31
  %v41 = vpop.permute.xlu0 %40
  %44 = vset.pattern.permute.xlu0 0
  %45 = vperm.xlu0 %44, %v32
  %v46 = vpop.permute.xlu0 %45
  %vm48 = vcmask 23552
  %v50 = vsel %vm48, %v27, 0
  %v53 = vsel %vm48, %v28, 0
  %v56 = vsel %vm48, %v29, 0
  %vm58 = vcmask 1042432
  %v60 = vsel %vm58, %v26, 0
  %62 = vmatpush.msra.mxu0 0.0
  %63 = vmatpush.msra.mxu0 0.0
  %64 = vmatpush.msra.mxu0 0.0
  %65 = vmatpush.msra.mxu0 0.0
  %66 = vmatpush.msra.mxu0 0.0
  %67 = vmatpush.msra.mxu0 0.0
  %68 = vmatpush.msra.mxu0 0.0
  %69 = vmatpush.msra.mxu0 0.0
  %70 = vmatpush.msra.mxu0 0.0
  %71 = vmatpush.msra.mxu0 0.0
  %72 = vmatpush.msra.mxu0 0.0
  %73 = vmatpush.msra.mxu0 0.0
  %74 = vmatpush.msra.mxu0 0.0
  %75 = vmatpush.msra.mxu0 0.0
  %76 = vmatpush.msra.mxu0 0.0
  %77 = vmatpush.msra.mxu0 %v60
  %78 = vmatmul.f32.gmra.mxu0 %v50
  %v79 = vpop.f32.mrf.mxu0
  %v80 = vadd.f32 %v36, %v79
  %81 = vmatmul.f32.gmra.mxu0 %v53
  %v82 = vpop.f32.mrf.mxu0
  %v83 = vadd.f32 %v41, %v82
  %84 = vmatmul.f32.gmra.mxu0 %v56
  %v85 = vpop.f32.mrf.mxu0
  %v86 = vadd.f32 %v46, %v85
  %87 = vdwg.mxu0
  %v88 = vmax.f32 %v80, 0.0
  %v89 = vmax.f32 %v83, 0.0
  %v90 = vmax.f32 %v86, 0.0
  %v91 = vld [vmem:[%s3] sm:$0xff]
  %v92 = vld [vmem:[%s3 + $0x8] sm:$0xff]
  %v93 = vld [vmem:[%s3 + $0x10] sm:$0xff]
  %v94 = vld [vmem:[%s4] sm:$0xff]
  %v95 = vld [vmem:[%s4 + $0x8] sm:$0xff]
  %v96 = vld [vmem:[%s4 + $0x10] sm:$0xff]
  %98 = vset.pattern.permute.xlu0 0
  %99 = vperm.xlu0 %98, %v94
  %v100 = vpop.permute.xlu0 %99
  %103 = vset.pattern.permute.xlu0 0
  %104 = vperm.xlu0 %103, %v95
  %v105 = vpop.permute.xlu0 %104
  %108 = vset.pattern.permute.xlu0 0
  %109 = vperm.xlu0 %108, %v96
  %v110 = vpop.permute.xlu0 %109
  %vm112 = vcmask 195584
  %v114 = vsel %vm112, %v91, 0
  %v117 = vsel %vm112, %v92, 0
  %v120 = vsel %vm112, %v93, 0
  %122 = vmatpush.msra.mxu0 0.0
  %123 = vmatpush.msra.mxu0 0.0
  %124 = vmatpush.msra.mxu0 0.0
  %125 = vmatpush.msra.mxu0 0.0
  %126 = vmatpush.msra.mxu0 0.0
  %127 = vmatpush.msra.mxu0 0.0
  %128 = vmatpush.msra.mxu0 0.0
  %129 = vmatpush.msra.mxu0 0.0
  %130 = vmatpush.msra.mxu0 0.0
  %131 = vmatpush.msra.mxu0 0.0
  %132 = vmatpush.msra.mxu0 0.0
  %133 = vmatpush.msra.mxu0 0.0
  %134 = vmatpush.msra.mxu0 0.0
  %135 = vmatpush.msra.mxu0 %v90
  %136 = vmatpush.msra.mxu0 %v89
  %137 = vmatpush.msra.mxu0 %v88
  %138 = vmatmul.f32.gmra.mxu0 %v114
  %v139 = vpop.f32.mrf.mxu0
  %v140 = vadd.f32 %v100, %v139
  %141 = vmatmul.f32.gmra.mxu0 %v117
  %v142 = vpop.f32.mrf.mxu0
  %v143 = vadd.f32 %v105, %v142
  %144 = vmatmul.f32.gmra.mxu0 %v120
  %v145 = vpop.f32.mrf.mxu0
  %v146 = vadd.f32 %v110, %v145
  %147 = vdwg.mxu0
  %v148 = vmax.f32 %v140, 0.0
  %v149 = vmax.f32 %v143, 0.0
  %v150 = vmax.f32 %v146, 0.0
  %v151 = vld [vmem:[%s5] sm:$0xff]
  %v152 = vld [vmem:[%s6] sm:$0xff]
  %154 = vset.pattern.permute.xlu0 0
  %155 = vperm.xlu0 %154, %v152
  %v156 = vpop.permute.xlu0 %155
  %v159 = vsel %vm112, %v151, 0
  %161 = vmatpush.msra.mxu0 0.0
  %162 = vmatpush.msra.mxu0 0.0
  %163 = vmatpush.msra.mxu0 0.0
  %164 = vmatpush.msra.mxu0 0.0
  %165 = vmatpush.msra.mxu0 0.0
  %166 = vmatpush.msra.mxu0 0.0
  %167 = vmatpush.msra.mxu0 0.0
  %168 = vmatpush.msra.mxu0 0.0
  %169 = vmatpush.msra.mxu0 0.0
  %170 = vmatpush.msra.mxu0 0.0
  %171 = vmatpush.msra.mxu0 0.0
  %172 = vmatpush.msra.mxu0 0.0
  %173 = vmatpush.msra.mxu0 0.0
  %174 = vmatpush.msra.mxu0 %v150
  %175 = vmatpush.msra.mxu0 %v149
  %176 = vmatpush.msra.mxu0 %v148
  %177 = vmatmul.f32.gmra.mxu0 %v159
  %v178 = vpop.f32.mrf.mxu0
  %v179 = vadd.f32 %v156, %v178
  %180 = vdwg.mxu0
  %v181 = vlaneseq
  %v182 = vshrl.u32 %v181, 7
  %vm183 = vcmp.lt.s32.totalorder %v182, 5
  %vm184 = vcmp.eq.s32.totalorder %v182, 5
  %v185 = vsel %vm183, %v179, -inf
  %v186 = vrot.slane %v185, 4
  %v187 = vmax.f32 %v185, %v186
  %v188 = vrot.slane %v187, 2
  %v189 = vmax.f32 %v187, %v188
  %v190 = vrot.slane %v189, 1
  %v191 = vmax.f32 %v189, %v190
  %v192 = vsub.f32 %v185, %v191
  %v193 = vmul.f32 %v192, 1.442695
  %v194 = vpow.pop %v193
  %v195 = vrot.slane %v194, 4
  %v196 = vadd.f32 %v194, %v195
  %v197 = vrot.slane %v196, 2
  %v198 = vadd.f32 %v196, %v197
  %v199 = vrot.slane %v198, 1
  %v200 = vadd.f32 %v198, %v199
  %v201 = vrcp.pop %v200
  %v202 = vmul.f32 %v200, %v201
  %v203 = vsub.f32 1.0, %v202
  %v204 = vmul.f32 %v201, %v203
  %v205 = vadd.f32 %v201, %v204
  %vm206 = vweird.f32 %v200
  %vm207 = vweird.f32 %v201
  %vm208 = vmor %vm206, %vm207
  %v209 = vsel %vm208, %v201, %v205
  %v210 = vand.u32 2147483647, %v200
  %vm211 = vcmp.eq.f32.partialorder %v210, 8.507059e+37
  %v212 = vand.u32 %v200, 2147483648
  %v213 = vor.u32 1.1754944e-38, %v212
  %v214 = vsel %vm211, %v213, %v209
  %v215 = vmul.f32 %v194, %v214
  %v216 = vsel %vm184, %v179, 0.0
  %v217 = vadd.f32 %v215, %v216
  %218 = vst [vmem:[%s7] sm:$0xff] %v217
  // Predicated region
  $region30: #{actor_critic_forward.1} parent=0 // pred_check
    _
  $region31: #{actor_critic_forward.1} parent=0 // pred_check_branch
    %220 = sbr.rel (0) target = $region33
  $region32: #{actor_critic_forward.1} parent=0 // pred_region
    _
  $region33: #{actor_critic_forward.1} parent=0 // pred_fallthru
    _
  // Predicated region
  $region34: #{actor_critic_forward.1} parent=0 // pred_check
    _
  $region35: #{actor_critic_forward.1} parent=0 // pred_check_branch
    %222 = sbr.rel (0) target = $region37
  $region36: #{actor_critic_forward.1} parent=0 // pred_region
    _
  $region37: #{actor_critic_forward.1} parent=0 // pred_fallthru
    _

</llo_original>
